<compile_context>
chip_gen: v7x
topology: tpu7x:2x2x1
jax: 0.10.0
libtpu: 0.0.40
codegen_flags: <defaults>
</compile_context>

<pallas_src>
import jax
import jax.numpy as jnp
from jax.experimental import pallas as pl
from jax.experimental.pallas import tpu as pltpu


def _round_up(a, b):
    return (a + b - 1) // b * b


def _cdiv(a, b):
    return (a + b - 1) // b


# Target working-set budget used to derive tile_m; comfortably inside every
# generation's scoped-VMEM ceiling once vmem_limit_bytes is set explicitly
# (v7x has only 64 MiB physical VMEM per TensorCore).
_VMEM_TARGET_BYTES = 24 * 1024 * 1024


def _derive_tiling(M, Dp, Kp, tile_m_req):
    """K/D-aware tile_m + explicit scoped-VMEM limit."""
    # Fixed residents: single-buffered codebook + 0.5*||c||^2 row.
    fixed = Kp * Dp * 4 + Kp * 4
    # Per-row cost: double-buffered x and q tiles (2*Dp words each), ~4 f32
    # (tile_m, Kp) temporaries (xc, d2, iota, onehot), 2 (tile_m, Dp) temps.
    per_row = 4 * (6 * Dp + 4 * Kp)
    avail = max(_VMEM_TARGET_BYTES - fixed, 0)
    tile_m = min(tile_m_req, max(avail // per_row, 8))
    # Megacore (v7x): keep at least two grid steps when there are enough rows
    # so the "parallel" grid axis actually feeds both TensorCores.
    if M >= 256:
        tile_m = min(tile_m, _round_up(_cdiv(M, 2), 128))
    # Never make the block taller than the (sublane-rounded) row count.
    tile_m = min(tile_m, _round_up(M, 8))
    # Keep M tiles MXU / sublane friendly.
    if tile_m >= 128:
        tile_m = (tile_m // 128) * 128
    else:
        tile_m = max((tile_m // 8) * 8, 8)
    num_tiles = _cdiv(M, tile_m)
    est = fixed + tile_m * per_row
    vmem_limit = int(min(max(int(est * 1.5), 32 * 1024 * 1024),
                         64 * 1024 * 1024))
    return tile_m, num_tiles, vmem_limit


def vq_forward(x, codebook, commitment_weight=1.0, *, tile_m=512,
               distance_in_bf16=False):
    """VQ forward. x: (..., D) float32, codebook: (K, D) float32.

    Returns (quantized, indices, loss) matching the PyTorch module's forward
    values (loss = code_loss + commitment_weight * embedding_loss, i.e.
    (1 + commitment_weight) * mean((codes - x)**2) in forward numerics).
    """
    orig_shape = x.shape
    D = orig_shape[-1]
    K = codebook.shape[0]
    # f32 iota / one-hot index extraction is exact only while K < 2**24.
    assert K < (1 << 24), "n_codes must be < 2**24 for exact index extraction"

    x2d = x.reshape(-1, D).astype(jnp.float32)
    M = x2d.shape[0]

    Dp = _round_up(D, 128)          # lane-dense feature axis
    Kp = _round_up(K, 128)          # lane-dense code axis for the distances
    tile_m, num_tiles, vmem_limit = _derive_tiling(M, Dp, Kp, tile_m)

    # Only pad the (cheap, grid-invariant-ish) feature / code axes; the row
    # axis uses a cdiv grid + in-kernel mask, so no extra HBM pass over x / q.
    x_in = x2d if Dp == D else jnp.pad(x2d, ((0, 0), (0, Dp - D)))
    cb = codebook.astype(jnp.float32)
    cb_pad = cb if (Dp == D and Kp == K) else jnp.pad(
        cb, ((0, Kp - K), (0, Dp - D)))

    # 0.5*||c||^2 hoisted out of the kernel (argmin of 0.5||c||^2 - x.c equals
    # argmin of ||x - c||^2); padded code rows get a sentinel so they never win.
    c2h = 0.5 * jnp.sum(cb_pad * cb_pad, axis=-1)
    c2h = jnp.where(jnp.arange(Kp) < K, c2h, jnp.float32(1e30)).reshape(1, Kp)

    need_row_mask = (M % tile_m) != 0      # static: only mask the tail tile
    mm_dtype = jnp.bfloat16 if distance_in_bf16 else jnp.float32

    def kernel(x_ref, cb_ref, c2_ref, q_ref, idx_ref, sq_ref):
        xt = x_ref[...]              # (tile_m, Dp) f32
        cbv = cb_ref[...]            # (Kp, Dp)    f32
        c2v = c2_ref[...]            # (1, Kp)     f32  (= 0.5*||c||^2)

        # Distance (up to a per-row constant): 0.5||c||^2 - x.c^T on the MXU.
        xc = jax.lax.dot_general(
            xt.astype(mm_dtype), cbv.astype(mm_dtype),
            (((1,), (1,)), ((), ())),
            preferred_element_type=jnp.float32)              # (tile_m, Kp)
        d2 = c2v - xc

        # First-occurrence argmin over codes (matches torch.min tie behavior).
        min_d = jnp.min(d2, axis=-1, keepdims=True)          # (tile_m, 1)
        lane_iota = jax.lax.broadcasted_iota(jnp.int32, d2.shape, 1)
        idx = jnp.min(jnp.where(d2 <= min_d, lane_iota, Kp),
                      axis=-1, keepdims=True)                 # (tile_m, 1)

        # Gather codes with a one-hot matmul (MXU-friendly gather, kept f32 so
        # emitted codes are exact even when the distance matmul is bf16).
        onehot = (lane_iota == idx).astype(jnp.float32)       # (tile_m, Kp)
        codes = jnp.dot(onehot, cbv,
                        preferred_element_type=jnp.float32)   # (tile_m, Dp)

        # Forward value of x + (codes - x).detach() is just `codes`.
        q_ref[...] = codes.astype(q_ref.dtype)

        # Lane-dense indices: idx_row[m] = sum_k k * onehot[m, k] — rides the
        # MXU, avoids an XLU transpose and any narrow masked store.  All 8
        # identical sublanes are written (full, unmasked vst tile).
        iota_k = jax.lax.broadcasted_iota(
            jnp.int32, (8, Kp), 1).astype(jnp.float32)
        idx_rows = jax.lax.dot_general(
            iota_k, onehot, (((1,), (1,)), ((), ())),
            preferred_element_type=jnp.float32)               # (8, tile_m)
        idx_ref[...] = idx_rows.astype(jnp.int32)

        # Per-tile partial sum of squared error, reduced to an (8, Dp) block
        # (no sublane-1 masked store); the wrapper finishes the reduction.
        diff = codes - xt
        sq = diff * diff
        if need_row_mask:
            row0 = pl.program_id(0) * tile_m
            rows = row0 + jax.lax.broadcasted_iota(jnp.int32, (tile_m, 1), 0)
            sq = jnp.where(rows < M, sq, 0.0)
        part = sq[0:8, :]
        for s in range(1, tile_m // 8):
            part = part + sq[s * 8:(s + 1) * 8, :]
        sq_ref[...] = part

    q_out, idx_out, sq_out = pl.pallas_call(
        kernel,
        out_shape=(
            jax.ShapeDtypeStruct((M, Dp), jnp.float32),
            jax.ShapeDtypeStruct((num_tiles * 8, tile_m), jnp.int32),
            jax.ShapeDtypeStruct((num_tiles * 8, Dp), jnp.float32),
        ),
        grid_spec=pltpu.PrefetchScalarGridSpec(
            num_scalar_prefetch=0,
            grid=(num_tiles,),
            in_specs=[
                pl.BlockSpec((tile_m, Dp), lambda i: (i, 0)),      # x tile
                pl.BlockSpec((Kp, Dp), lambda i: (0, 0),           # codebook
                             pipeline_mode=pl.Buffered(1)),        #  (resident)
                pl.BlockSpec((1, Kp), lambda i: (0, 0),            # 0.5*||c||^2
                             pipeline_mode=pl.Buffered(1)),
            ],
            out_specs=[
                pl.BlockSpec((tile_m, Dp), lambda i: (i, 0)),      # quantized
                pl.BlockSpec((8, tile_m), lambda i: (i, 0)),       # indices
                pl.BlockSpec((8, Dp), lambda i: (i, 0)),           # sq partials
            ],
        ),
        compiler_params=pltpu.CompilerParams(
            # Every output block is written exactly once -> parallel grid axis
            # (2x on v7x megacore; harmless on single-TC v5e/v6e).
            dimension_semantics=("parallel",),
            vmem_limit_bytes=vmem_limit,
        ),
    )(x_in, cb_pad, c2h)

    quantized = (q_out if Dp == D else q_out[:, :D]).reshape(orig_shape)
    indices = (idx_out.reshape(num_tiles, 8, tile_m)[:, 0, :]
               .reshape(-1)[:M].reshape(orig_shape[:-1]))
    mean_sq = jnp.sum(sq_out) / jnp.float32(M * D)
    loss = mean_sq * jnp.float32(1.0 + commitment_weight)
    return quantized, indices, loss


def _vq_reference(x, codebook, commitment_weight=1.0):
    # Pure-JAX reference mirroring the PyTorch forward.
    d = jnp.sqrt(jnp.maximum(
        jnp.sum((x[..., None, :] - codebook) ** 2, axis=-1), 0.0))
    idx = jnp.argmin(d, axis=-1)
    codes = codebook[idx]
    code_loss = jnp.mean((codes - x) ** 2)
    emb_loss = jnp.mean((x - codes) ** 2) * commitment_weight
    quantized = x + (codes - x)
    return quantized, idx, code_loss + emb_loss


if __name__ == "__main__":
    # Small shapes consistent with the module: batch=2, seq=8, code_dim=32,
    # n_codes=16, commitment_weight=1.
    code_dim = 32
    n_codes = 16
    commitment_weight = 1.0

    key = jax.random.PRNGKey(0)
    k_x, k_cb = jax.random.split(key)
    x = jax.random.normal(k_x, (2, 8, code_dim), dtype=jnp.float32)
    # Deterministic codebook init: normal(0, 1), like the PyTorch module.
    codebook = jax.random.normal(k_cb, (n_codes, code_dim), dtype=jnp.float32)

    quantized, indices, loss = vq_forward(x, codebook, commitment_weight)
    jax.block_until_ready((quantized, indices, loss))

    # Sanity check against the pure-JAX reference.
    q_ref, idx_ref, loss_ref = _vq_reference(x, codebook, commitment_weight)
    assert jnp.allclose(quantized, q_ref, atol=1e-5), "quantized mismatch"
    assert jnp.array_equal(indices, idx_ref), "indices mismatch"
    assert jnp.allclose(loss, loss_ref, atol=1e-5), "loss mismatch"

    print("KERNEL_OK")
</pallas_src>

<mosaic_0001>
module attributes {stable_mosaic.version = 11 : i64} {
  func.func @kernel(%arg0: i32, %arg1: memref<16x128xf32, #tpu.memory_space<vmem>>, %arg2: memref<128x128xf32, #tpu.memory_space<vmem>>, %arg3: memref<1x128xf32, #tpu.memory_space<vmem>>, %arg4: memref<16x128xf32, #tpu.memory_space<vmem>>, %arg5: memref<8x16xi32, #tpu.memory_space<vmem>>, %arg6: memref<8x128xf32, #tpu.memory_space<vmem>>) attributes {dimension_semantics = [#tpu.dimension_semantics<parallel>], iteration_bounds = array<i64: 1>, scalar_prefetch = 0 : i64, scratch_operands = 0 : i64, tpu.core_type = #tpu.core_type<tc>, window_params = [{transform_indices = @transform_0, window_bounds = array<i64: 16, 128>}, {pipeline_mode = #tpu.pipeline_mode<synchronous>, transform_indices = @transform_1, window_bounds = array<i64: 128, 128>}, {pipeline_mode = #tpu.pipeline_mode<synchronous>, transform_indices = @transform_2, window_bounds = array<i64: 1, 128>}, {transform_indices = @transform_3, window_bounds = array<i64: 16, 128>}, {transform_indices = @transform_4, window_bounds = array<i64: 8, 16>}, {transform_indices = @transform_5, window_bounds = array<i64: 8, 128>}]} {
    %c0 = arith.constant 0 : index
    %c0_0 = arith.constant 0 : index
    %0 = vector.load %arg1[%c0, %c0_0] : memref<16x128xf32, #tpu.memory_space<vmem>>, vector<16x128xf32>
    %c0_1 = arith.constant 0 : index
    %c0_2 = arith.constant 0 : index
    %1 = vector.load %arg2[%c0_1, %c0_2] : memref<128x128xf32, #tpu.memory_space<vmem>>, vector<128x128xf32>
    %c0_3 = arith.constant 0 : index
    %c0_4 = arith.constant 0 : index
    %2 = vector.load %arg3[%c0_3, %c0_4] : memref<1x128xf32, #tpu.memory_space<vmem>>, vector<1x128xf32>
    %cst = arith.constant dense<0.000000e+00> : vector<16x128xf32>
    %3 = tpu.matmul %0, %1, %cst {dimension_numbers = #tpu.dot_dimension_numbers<[1], [1], [0], [0], [0, 0, 1, 0], [], []>} : vector<16x128xf32>, vector<128x128xf32>, vector<16x128xf32> -> vector<16x128xf32>
    %4 = vector.broadcast %2 : vector<1x128xf32> to vector<16x128xf32>
    %5 = arith.subf %4, %3 : vector<16x128xf32>
    %cst_5 = arith.constant dense<0x7F800000> : vector<16xf32>
    %6 = vector.multi_reduction <minimumf>, %5, %cst_5 [1] : vector<16x128xf32> to vector<16xf32>
    %7 = vector.shape_cast %6 : vector<16xf32> to vector<16x1xf32>
    %8 = tpu.iota {dimensions = array<i32: 1>} : vector<16x128xi32>
    %9 = vector.broadcast %7 : vector<16x1xf32> to vector<16x128xf32>
    %10 = arith.cmpf ole, %5, %9 : vector<16x128xf32>
    %c128_i32 = arith.constant 128 : i32
    %11 = vector.broadcast %c128_i32 : i32 to vector<16x128xi32>
    %12 = arith.select %10, %8, %11 : vector<16x128xi1>, vector<16x128xi32>
    %cst_6 = arith.constant dense<2147483647> : vector<16xi32>
    %13 = vector.multi_reduction <minsi>, %12, %cst_6 [1] : vector<16x128xi32> to vector<16xi32>
    %14 = vector.shape_cast %13 : vector<16xi32> to vector<16x1xi32>
    %15 = vector.broadcast %14 : vector<16x1xi32> to vector<16x128xi32>
    %16 = arith.cmpi eq, %8, %15 : vector<16x128xi32>
    %17 = arith.extui %16 : vector<16x128xi1> to vector<16x128xi32>
    %18 = arith.sitofp %17 : vector<16x128xi32> to vector<16x128xf32>
    %cst_7 = arith.constant dense<0.000000e+00> : vector<16x128xf32>
    %19 = tpu.matmul %18, %1, %cst_7 {dimension_numbers = #tpu.dot_dimension_numbers<[1], [0], [0], [1], [0, 0, 1, 1], [], []>} : vector<16x128xf32>, vector<128x128xf32>, vector<16x128xf32> -> vector<16x128xf32>
    %c0_8 = arith.constant 0 : index
    %c0_9 = arith.constant 0 : index
    %20 = vector.load %arg4[%c0_8, %c0_9] : memref<16x128xf32, #tpu.memory_space<vmem>>, vector<16x128xf32>
    tpu.vector_store %arg4[%c0_8, %c0_9], %19 {strides = array<i32>} : memref<16x128xf32, #tpu.memory_space<vmem>>, vector<16x128xf32>,
    %21 = tpu.iota {dimensions = array<i32: 1>} : vector<8x128xi32>
    %22 = arith.sitofp %21 : vector<8x128xi32> to vector<8x128xf32>
    %cst_10 = arith.constant dense<0.000000e+00> : vector<8x16xf32>
    %23 = tpu.matmul %22, %18, %cst_10 {dimension_numbers = #tpu.dot_dimension_numbers<[1], [1], [0], [0], [0, 0, 1, 0], [], []>} : vector<8x128xf32>, vector<16x128xf32>, vector<8x16xf32> -> vector<8x16xf32>
    %24 = arith.fptosi %23 : vector<8x16xf32> to vector<8x16xi32>
    %c0_11 = arith.constant 0 : index
    %c0_12 = arith.constant 0 : index
    %25 = vector.load %arg5[%c0_11, %c0_12] : memref<8x16xi32, #tpu.memory_space<vmem>>, vector<8x16xi32>
    tpu.vector_store %arg5[%c0_11, %c0_12], %24 {strides = array<i32>} : memref<8x16xi32, #tpu.memory_space<vmem>>, vector<8x16xi32>,
    %26 = arith.subf %19, %0 : vector<16x128xf32>
    %27 = arith.mulf %26, %26 : vector<16x128xf32>
    %28 = vector.extract_strided_slice %27 {offsets = [0, 0], sizes = [8, 128], strides = [1, 1]} : vector<16x128xf32> to vector<8x128xf32>
    %29 = vector.extract_strided_slice %27 {offsets = [8, 0], sizes = [8, 128], strides = [1, 1]} : vector<16x128xf32> to vector<8x128xf32>
    %30 = arith.addf %28, %29 : vector<8x128xf32>
    %c0_13 = arith.constant 0 : index
    %c0_14 = arith.constant 0 : index
    %31 = vector.load %arg6[%c0_13, %c0_14] : memref<8x128xf32, #tpu.memory_space<vmem>>, vector<8x128xf32>
    tpu.vector_store %arg6[%c0_13, %c0_14], %30 {strides = array<i32>} : memref<8x128xf32, #tpu.memory_space<vmem>>, vector<8x128xf32>,
    return
  }
  func.func @transform_0(%arg0: i32) -> (i32, i32) {
    %c0_i32 = arith.constant 0 : i32
    %c0_i32_0 = arith.constant 0 : i32
    return %arg0, %c0_i32 : i32, i32
  }
  func.func @transform_1(%arg0: i32) -> (i32, i32) {
    %c0_i32 = arith.constant 0 : i32
    %c0_i32_0 = arith.constant 0 : i32
    %c0_i32_1 = arith.constant 0 : i32
    return %c0_i32, %c0_i32_0 : i32, i32
  }
  func.func @transform_2(%arg0: i32) -> (i32, i32) {
    %c0_i32 = arith.constant 0 : i32
    %c0_i32_0 = arith.constant 0 : i32
    %c0_i32_1 = arith.constant 0 : i32
    return %c0_i32, %c0_i32_0 : i32, i32
  }
  func.func @transform_3(%arg0: i32) -> (i32, i32) {
    %c0_i32 = arith.constant 0 : i32
    %c0_i32_0 = arith.constant 0 : i32
    return %arg0, %c0_i32 : i32, i32
  }
  func.func @transform_4(%arg0: i32) -> (i32, i32) {
    %c0_i32 = arith.constant 0 : i32
    %c0_i32_0 = arith.constant 0 : i32
    return %arg0, %c0_i32 : i32, i32
  }
  func.func @transform_5(%arg0: i32) -> (i32, i32) {
    %c0_i32 = arith.constant 0 : i32
    %c0_i32_0 = arith.constant 0 : i32
    return %arg0, %c0_i32 : i32, i32
  }
}

</mosaic_0001>

<llo_original>
// kernel: tpu_custom_call.1
$region0: #{tpu_custom_call.1}
  #allocation0 [shape = 'u32[]', space=smem, size = 0x4, offset = 0x4, fixed_abs, tag = 'smem constant byte address 0x4 - core index']
  #allocation1 [shape = 'u32[144,128]{1,0:T(1,128)}', space=vmem, size = 0x12000, scoped, tag = 'internal scratch']
  %s0 = inlined_call_operand.hbm [shape: f32[16,128], index: 0, kind: input, shape index: {}]
  %s1 = inlined_call_operand.hbm [shape: f32[128,128], index: 1, kind: input, shape index: {}]
  %s2 = inlined_call_operand.vmem [shape: f32[1,128], index: 2, kind: input, shape index: {}]
  %s3 = inlined_call_operand.hbm [shape: f32[16,128], index: 3, kind: output, shape index: {0}]
  %s4 = inlined_call_operand.hbm [shape: s32[8,16], index: 4, kind: output, shape index: {1}]
  %s5 = inlined_call_operand.hbm [shape: f32[8,128], index: 5, kind: output, shape index: {2}]
  %6 = xla_tuple %s3, %s4, %s5
  %s7 = sld [smem:[#allocation0]]
  $region46: #{tpu_custom_call.1} parent=0
    _
  %s9 = ssub.s32 1, %s7
  %s10 = scalar_select 0, %s9, %s7
  $region1: #{tpu_custom_call.1} parent=0
    #allocation2 [shape = 'u8[8192]{0}', space=vmem, size = 0x2000, scoped, tag = 'input window, operand 0, single buffered']
    #allocation3 [shape = 's32[1]{0}', space=sflag, size = 0x4, scoped, tag = 'scoped memory for tpu_custom_call.1']
    #allocation4 [shape = 's32[1]{0}', space=sflag, size = 0x4, scoped, tag = 'scoped memory for tpu_custom_call.1']
    #allocation5 [shape = 'u8[65536]{0}', space=vmem, size = 0x10000, scoped, tag = 'input window, operand 1, single buffered']
    #allocation6 [shape = 's32[1]{0}', space=sflag, size = 0x4, scoped, tag = 'scoped memory for tpu_custom_call.1']
    #allocation7 [shape = 'u8[8192]{0}', space=vmem, size = 0x2000, scoped, tag = 'output window, operand 0, single buffered']
    #allocation8 [shape = 'u8[4096]{0}', space=vmem, size = 0x1000, scoped, tag = 'output window, operand 1, single buffered']
    #allocation9 [shape = 's32[1]{0}', space=sflag, size = 0x4, scoped, tag = 'scoped memory for tpu_custom_call.1']
    #allocation10 [shape = 'u8[4096]{0}', space=vmem, size = 0x1000, scoped, tag = 'output window, operand 2, single buffered']
    %11 = vsyncpa [#allocation3], 0
    %12 = vsyncpa [#allocation6], 0
    %13 = vsyncpa [#allocation4], 0
    %14 = vsyncpa [#allocation9], 0
    // Predicated region
    $region2: #{tpu_custom_call.1} parent=1 // pred_check
      _
    $region3: #{tpu_custom_call.1} parent=1 // pred_check_branch
      %16 = sbr.rel (0) target = $region5
    $region4: #{tpu_custom_call.1} parent=1 // pred_region
      %s18 = ssub.s32 256, 256
      %19 = vsyncadd [#allocation3], %s18
      %s20 = sshll.u32 [#allocation2], 4
      %s21 = int_to_ptr.vmem [resolvable:$true] %s20
      %26 = dma.hbm_to_vmem [thread:$0]  %s0, 256, %s21, [#allocation3], 128, 128, 8
    $region5: #{tpu_custom_call.1} parent=1 // pred_fallthru
      _
    // Predicated region
    $region6: #{tpu_custom_call.1} parent=1 // pred_check
      _
    $region7: #{tpu_custom_call.1} parent=1 // pred_check_branch
      %28 = sbr.rel (0) target = $region9
    $region8: #{tpu_custom_call.1} parent=1 // pred_region
      %s30 = ssub.s32 2048, 2048
      %31 = vsyncadd [#allocation6], %s30
      %s32 = sshll.u32 [#allocation5], 4
      %s33 = int_to_ptr.vmem [resolvable:$true] %s32
      %38 = dma.hbm_to_vmem [thread:$0]  %s1, 2048, %s33, [#allocation6], 128, 128, 8
    $region9: #{tpu_custom_call.1} parent=1 // pred_fallthru
      _
    // Predicated region
    $region10: #{tpu_custom_call.1} parent=1 // pred_check
      _
    $region11: #{tpu_custom_call.1} parent=1 // pred_check_branch
      %40 = sbr.rel (0) target = $region13
    $region12: #{tpu_custom_call.1} parent=1 // pred_region
      _
    $region13: #{tpu_custom_call.1} parent=1 // pred_fallthru
      _
    // Predicated region
    $region14: #{tpu_custom_call.1} parent=1 // pred_check
      _
    $region15: #{tpu_custom_call.1} parent=1 // pred_check_branch
      %42 = sbr.rel (0) target = $region17
    $region16: #{tpu_custom_call.1} parent=1 // pred_region
      %43 = dma.done [#allocation3], 256
    $region17: #{tpu_custom_call.1} parent=1 // pred_fallthru
      _
    // Predicated region
    $region18: #{tpu_custom_call.1} parent=1 // pred_check
      _
    $region19: #{tpu_custom_call.1} parent=1 // pred_check_branch
      %45 = sbr.rel (0) target = $region21
    $region20: #{tpu_custom_call.1} parent=1 // pred_region
      %46 = dma.done [#allocation6], 2048
    $region21: #{tpu_custom_call.1} parent=1 // pred_fallthru
      _
    %v47 = vld [vmem:[#allocation2] sm:$0xff]
    %v48 = vld [vmem:[#allocation2 + $0x8] sm:$0xff]
    %v49 = vld [vmem:[#allocation5] sm:$0xff]
    %v50 = vld [vmem:[#allocation5 + $0x8] sm:$0xff]
    %v51 = vld [vmem:[#allocation5 + $0x10] sm:$0xff]
    %v52 = vld [vmem:[#allocation5 + $0x18] sm:$0xff]
    %v53 = vld [vmem:[#allocation5 + $0x20] sm:$0xff]
    %v54 = vld [vmem:[#allocation5 + $0x28] sm:$0xff]
    %v55 = vld [vmem:[#allocation5 + $0x30] sm:$0xff]
    %v56 = vld [vmem:[#allocation5 + $0x38] sm:$0xff]
    %v57 = vld [vmem:[#allocation5 + $0x40] sm:$0xff]
    %v58 = vld [vmem:[#allocation5 + $0x48] sm:$0xff]
    %v59 = vld [vmem:[#allocation5 + $0x50] sm:$0xff]
    %v60 = vld [vmem:[#allocation5 + $0x58] sm:$0xff]
    %v61 = vld [vmem:[#allocation5 + $0x60] sm:$0xff]
    %v62 = vld [vmem:[#allocation5 + $0x68] sm:$0xff]
    %v63 = vld [vmem:[#allocation5 + $0x70] sm:$0xff]
    %v64 = vld [vmem:[#allocation5 + $0x78] sm:$0xff]
    %v65 = vld [vmem:[%s2] sm:$0x1]
    %66 = vmatprep.subr.mxu0 0.0
    %67 = vmatpush1.xpose.msra.mxu0 %v49
    %68 = vmatprep.subr.mxu0 0.0
    %69 = vmatpush1.xpose.msra.mxu0 %v50
    %70 = vmatprep.subr.mxu0 0.0
    %71 = vmatpush1.xpose.msra.mxu0 %v51
    %72 = vmatprep.subr.mxu0 0.0
    %73 = vmatpush1.xpose.msra.mxu0 %v52
    %74 = vmatprep.subr.mxu0 0.0
    %75 = vmatpush1.xpose.msra.mxu0 %v53
    %76 = vmatprep.subr.mxu0 0.0
    %77 = vmatpush1.xpose.msra.mxu0 %v54
    %78 = vmatprep.subr.mxu0 0.0
    %79 = vmatpush1.xpose.msra.mxu0 %v55
    %80 = vmatprep.subr.mxu0 0.0
    %81 = vmatpush1.xpose.msra.mxu0 %v56
    %82 = vmatprep.subr.mxu0 0.0
    %83 = vmatpush1.xpose.msra.mxu0 %v57
    %84 = vmatprep.subr.mxu0 0.0
    %85 = vmatpush1.xpose.msra.mxu0 %v58
    %86 = vmatprep.subr.mxu0 0.0
    %87 = vmatpush1.xpose.msra.mxu0 %v59
    %88 = vmatprep.subr.mxu0 0.0
    %89 = vmatpush1.xpose.msra.mxu0 %v60
    %90 = vmatprep.subr.mxu0 0.0
    %91 = vmatpush1.xpose.msra.mxu0 %v61
    %92 = vmatprep.subr.mxu0 0.0
    %93 = vmatpush1.xpose.msra.mxu0 %v62
    %94 = vmatprep.subr.mxu0 0.0
    %95 = vmatpush1.xpose.msra.mxu0 %v63
    %96 = vmatprep.subr.mxu0 0.0
    %97 = vmatpush1.xpose.msra.mxu0 %v64
    %98 = vmatprep.subr.mxu0 0.0
    %99 = vmatpush1.xpose.msra.mxu0 0.0
    %100 = vmatprep.subr.mxu0 0.0
    %101 = vmatpush1.xpose.msra.mxu0 0.0
    %102 = vmatprep.subr.mxu0 0.0
    %103 = vmatpush1.xpose.msra.mxu0 0.0
    %104 = vmatprep.subr.mxu0 0.0
    %105 = vmatpush1.xpose.msra.mxu0 0.0
    %106 = vmatprep.subr.mxu0 0.0
    %107 = vmatpush1.xpose.msra.mxu0 0.0
    %108 = vmatprep.subr.mxu0 0.0
    %109 = vmatpush1.xpose.msra.mxu0 0.0
    %110 = vmatprep.subr.mxu0 0.0
    %111 = vmatpush1.xpose.msra.mxu0 0.0
    %112 = vmatprep.subr.mxu0 0.0
    %113 = vmatpush1.xpose.msra.mxu0 0.0
    %114 = vmatprep.subr.mxu0 0.0
    %115 = vmatpush1.xpose.msra.mxu0 0.0
    %116 = vmatprep.subr.mxu0 0.0
    %117 = vmatpush1.xpose.msra.mxu0 0.0
    %118 = vmatprep.subr.mxu0 0.0
    %119 = vmatpush1.xpose.msra.mxu0 0.0
    %120 = vmatprep.subr.mxu0 0.0
    %121 = vmatpush1.xpose.msra.mxu0 0.0
    %122 = vmatprep.subr.mxu0 0.0
    %123 = vmatpush1.xpose.msra.mxu0 0.0
    %124 = vmatprep.subr.mxu0 0.0
    %125 = vmatpush1.xpose.msra.mxu0 0.0
    %126 = vmatprep.subr.mxu0 0.0
    %127 = vmatpush1.xpose.msra.mxu0 0.0
    %128 = vmatprep.subr.mxu0 0.0
    %129 = vmatpush1.xpose.msra.mxu0 0.0
    %130 = vmatprep.mubr.f32.mxu0 0.0
    %131 = vmatmul.mubr.f32.gmra.mrb[0].mxu0 %v47
    %v132 = vpop.f32.mrb[0].mxu0
    %v133 = vadd.f32 0.0, %v132
    %v134 = vpop.f32.mrb[0].mxu0
    %135 = vmatprep.mubr.f32.mxu0 0.0
    %136 = vmatmul.mubr.f32.gmra.mrb[0].mxu0 %v48
    %v137 = vpop.f32.mrb[0].mxu0
    %v138 = vadd.f32 0.0, %v137
    %v139 = vpop.f32.mrb[0].mxu0
    %140 = vdwg.mxu0
    %v142 = vlaneseq
    %v143 = vshrl.u32 %v142, 7
    %v144 = vsub.s32 0, %v143
    %v145 = vrot.slane %v65, %v144
    %v147 = vsub.f32 %v145, %v133
    %v148 = vsub.f32 %v145, %v138
    %149 = vmin.xlane.f32.xlu0 %v147
    %v150 = vpop.xlane.xlu0 %149
    %151 = vmin.xlane.f32.xlu0 %v148
    %v152 = vpop.xlane.xlu0 %151
    %v153 = vlaneseq
    %v154 = vand.u32 %v153, 127
    %vm155 = vcmp.le.f32.partialorder %v147, %v150
    %vm156 = vcmp.le.f32.partialorder %v148, %v152
    %v157 = vsel %vm155, %v154, 128
    %v158 = vsel %vm156, %v154, 128
    %v159 = vand.u32 %v157, 65535
    %v160 = vshra.s32 %v157, 16
    %v161 = vcvt.s32.f32 %v159
    %v162 = vcvt.s32.f32 %v160
    %163 = vmin.xlane.f32.xlu0 %v162
    %v164 = vpop.xlane.xlu0 %163
    %vm165 = vcmp.eq.f32.partialorder %v162, %v164
    %v166 = vsel %vm165, %v161, inf
    %167 = vmin.xlane.f32.xlu0 %v166
    %v168 = vpop.xlane.xlu0 %167
    %v169 = vcvt.f32.s32 %v168
    %v170 = vcvt.f32.s32 %v164
    %v171 = vshll.u32 %v170, 16
    %v172 = vadd.s32 %v171, %v169
    %v173 = vand.u32 %v158, 65535
    %v174 = vshra.s32 %v158, 16
    %v175 = vcvt.s32.f32 %v173
    %v176 = vcvt.s32.f32 %v174
    %177 = vmin.xlane.f32.xlu0 %v176
    %v178 = vpop.xlane.xlu0 %177
    %vm179 = vcmp.eq.f32.partialorder %v176, %v178
    %v180 = vsel %vm179, %v175, inf
    %181 = vmin.xlane.f32.xlu0 %v180
    %v182 = vpop.xlane.xlu0 %181
    %v183 = vcvt.f32.s32 %v182
    %v184 = vcvt.f32.s32 %v178
    %v185 = vshll.u32 %v184, 16
    %v186 = vadd.s32 %v185, %v183
    %vm187 = vcmp.eq.s32.totalorder %v154, %v172
    %vm188 = vcmp.eq.s32.totalorder %v154, %v186
    %v189 = vsel %vm187, 1, 0
    %v190 = vsel %vm188, 1, 0
    %v191 = vcvt.s32.f32 %v189
    %v192 = vcvt.s32.f32 %v190
    %193 = vmatprep.subr.mxu0 0.0
    %194 = vmatpush1.msra.mxu0 %v49
    %195 = vmatprep.subr.mxu0 0.0
    %196 = vmatpush1.msra.mxu0 %v50
    %197 = vmatprep.subr.mxu0 0.0
    %198 = vmatpush1.msra.mxu0 %v51
    %199 = vmatprep.subr.mxu0 0.0
    %200 = vmatpush1.msra.mxu0 %v52
    %201 = vmatprep.subr.mxu0 0.0
    %202 = vmatpush1.msra.mxu0 %v53
    %203 = vmatprep.subr.mxu0 0.0
    %204 = vmatpush1.msra.mxu0 %v54
    %205 = vmatprep.subr.mxu0 0.0
    %206 = vmatpush1.msra.mxu0 %v55
    %207 = vmatprep.subr.mxu0 0.0
    %208 = vmatpush1.msra.mxu0 %v56
    %209 = vmatprep.subr.mxu0 0.0
    %210 = vmatpush1.msra.mxu0 %v57
    %211 = vmatprep.subr.mxu0 0.0
    %212 = vmatpush1.msra.mxu0 %v58
    %213 = vmatprep.subr.mxu0 0.0
    %214 = vmatpush1.msra.mxu0 %v59
    %215 = vmatprep.subr.mxu0 0.0
    %216 = vmatpush1.msra.mxu0 %v60
    %217 = vmatprep.subr.mxu0 0.0
    %218 = vmatpush1.msra.mxu0 %v61
    %219 = vmatprep.subr.mxu0 0.0
    %220 = vmatpush1.msra.mxu0 %v62
    %221 = vmatprep.subr.mxu0 0.0
    %222 = vmatpush1.msra.mxu0 %v63
    %223 = vmatprep.subr.mxu0 0.0
    %224 = vmatpush1.msra.mxu0 %v64
    %225 = vmatprep.subr.mxu0 0.0
    %226 = vmatpush1.msra.mxu0 0.0
    %227 = vmatprep.subr.mxu0 0.0
    %228 = vmatpush1.msra.mxu0 0.0
    %229 = vmatprep.subr.mxu0 0.0
    %230 = vmatpush1.msra.mxu0 0.0
    %231 = vmatprep.subr.mxu0 0.0
    %232 = vmatpush1.msra.mxu0 0.0
    %233 = vmatprep.subr.mxu0 0.0
    %234 = vmatpush1.msra.mxu0 0.0
    %235 = vmatprep.subr.mxu0 0.0
    %236 = vmatpush1.msra.mxu0 0.0
    %237 = vmatprep.subr.mxu0 0.0
    %238 = vmatpush1.msra.mxu0 0.0
    %239 = vmatprep.subr.mxu0 0.0
    %240 = vmatpush1.msra.mxu0 0.0
    %241 = vmatprep.subr.mxu0 0.0
    %242 = vmatpush1.msra.mxu0 0.0
    %243 = vmatprep.subr.mxu0 0.0
    %244 = vmatpush1.msra.mxu0 0.0
    %245 = vmatprep.subr.mxu0 0.0
    %246 = vmatpush1.msra.mxu0 0.0
    %247 = vmatprep.subr.mxu0 0.0
    %248 = vmatpush1.msra.mxu0 0.0
    %249 = vmatprep.subr.mxu0 0.0
    %250 = vmatpush1.msra.mxu0 0.0
    %251 = vmatprep.subr.mxu0 0.0
    %252 = vmatpush1.msra.mxu0 0.0
    %253 = vmatprep.subr.mxu0 0.0
    %254 = vmatpush1.msra.mxu0 0.0
    %255 = vmatprep.subr.mxu0 0.0
    %256 = vmatpush1.msra.mxu0 0.0
    %257 = vmatprep.mubr.f32.mxu0 0.0
    %258 = vmatmul.mubr.f32.gmra.mrb[0].mxu0 %v191
    %v259 = vpop.f32.mrb[0].mxu0
    %v260 = vadd.f32 0.0, %v259
    %v261 = vpop.f32.mrb[0].mxu0
    %262 = vmatprep.mubr.f32.mxu0 0.0
    %263 = vmatmul.mubr.f32.gmra.mrb[0].mxu0 %v192
    %v264 = vpop.f32.mrb[0].mxu0
    %v265 = vadd.f32 0.0, %v264
    %v266 = vpop.f32.mrb[0].mxu0
    %267 = vdwg.mxu0
    %268 = vst [vmem:[#allocation7] sm:$0xff] %v260
    %269 = vst [vmem:[#allocation7 + $0x8] sm:$0xff] %v265
    %v270 = vcvt.s32.f32 %v154
    %271 = vmatprep.subr.mxu0 0.0
    %272 = vmatpush1.xpose.msra.mxu0 %v191
    %273 = vmatprep.subr.mxu0 0.0
    %274 = vmatpush1.xpose.msra.mxu0 %v192
    %275 = vmatprep.subr.mxu0 0.0
    %276 = vmatpush1.xpose.msra.mxu0 0.0
    %277 = vmatprep.subr.mxu0 0.0
    %278 = vmatpush1.xpose.msra.mxu0 0.0
    %279 = vmatprep.subr.mxu0 0.0
    %280 = vmatpush1.xpose.msra.mxu0 0.0
    %281 = vmatprep.subr.mxu0 0.0
    %282 = vmatpush1.xpose.msra.mxu0 0.0
    %283 = vmatprep.subr.mxu0 0.0
    %284 = vmatpush1.xpose.msra.mxu0 0.0
    %285 = vmatprep.subr.mxu0 0.0
    %286 = vmatpush1.xpose.msra.mxu0 0.0
    %287 = vmatprep.subr.mxu0 0.0
    %288 = vmatpush1.xpose.msra.mxu0 0.0
    %289 = vmatprep.subr.mxu0 0.0
    %290 = vmatpush1.xpose.msra.mxu0 0.0
    %291 = vmatprep.subr.mxu0 0.0
    %292 = vmatpush1.xpose.msra.mxu0 0.0
    %293 = vmatprep.subr.mxu0 0.0
    %294 = vmatpush1.xpose.msra.mxu0 0.0
    %295 = vmatprep.subr.mxu0 0.0
    %296 = vmatpush1.xpose.msra.mxu0 0.0
    %297 = vmatprep.subr.mxu0 0.0
    %298 = vmatpush1.xpose.msra.mxu0 0.0
    %299 = vmatprep.subr.mxu0 0.0
    %300 = vmatpush1.xpose.msra.mxu0 0.0
    %301 = vmatprep.subr.mxu0 0.0
    %302 = vmatpush1.xpose.msra.mxu0 0.0
    %303 = vmatprep.subr.mxu0 0.0
    %304 = vmatpush1.xpose.msra.mxu0 0.0
    %305 = vmatprep.subr.mxu0 0.0
    %306 = vmatpush1.xpose.msra.mxu0 0.0
    %307 = vmatprep.subr.mxu0 0.0
    %308 = vmatpush1.xpose.msra.mxu0 0.0
    %309 = vmatprep.subr.mxu0 0.0
    %310 = vmatpush1.xpose.msra.mxu0 0.0
    %311 = vmatprep.subr.mxu0 0.0
    %312 = vmatpush1.xpose.msra.mxu0 0.0
    %313 = vmatprep.subr.mxu0 0.0
    %314 = vmatpush1.xpose.msra.mxu0 0.0
    %315 = vmatprep.subr.mxu0 0.0
    %316 = vmatpush1.xpose.msra.mxu0 0.0
    %317 = vmatprep.subr.mxu0 0.0
    %318 = vmatpush1.xpose.msra.mxu0 0.0
    %319 = vmatprep.subr.mxu0 0.0
    %320 = vmatpush1.xpose.msra.mxu0 0.0
    %321 = vmatprep.subr.mxu0 0.0
    %322 = vmatpush1.xpose.msra.mxu0 0.0
    %323 = vmatprep.subr.mxu0 0.0
    %324 = vmatpush1.xpose.msra.mxu0 0.0
    %325 = vmatprep.subr.mxu0 0.0
    %326 = vmatpush1.xpose.msra.mxu0 0.0
    %327 = vmatprep.subr.mxu0 0.0
    %328 = vmatpush1.xpose.msra.mxu0 0.0
    %329 = vmatprep.subr.mxu0 0.0
    %330 = vmatpush1.xpose.msra.mxu0 0.0
    %331 = vmatprep.subr.mxu0 0.0
    %332 = vmatpush1.xpose.msra.mxu0 0.0
    %333 = vmatprep.subr.mxu0 0.0
    %334 = vmatpush1.xpose.msra.mxu0 0.0
    %335 = vmatprep.mubr.f32.mxu0 0.0
    %336 = vmatmul.mubr.f32.gmra.mrb[0].mxu0 %v270
    %v337 = vpop.f32.mrb[0].mxu0
    %v338 = vadd.f32 0.0, %v337
    %v339 = vpop.f32.mrb[0].mxu0
    %340 = vdwg.mxu0
    %v341 = vcvt.f32.s32.to.zero.pseudo %v338
    %vm342 = vcmask 130048
    %343 = vst.msk [vmem:[#allocation8] sm:$0xff] %vm342, %v341
    %v344 = vsub.f32 %v260, %v47
    %v345 = vsub.f32 %v265, %v48
    %v346 = vmul.f32 %v344, %v344
    %v347 = vmul.f32 %v345, %v345
    %v348 = vadd.f32 %v346, %v347
    %349 = vst [vmem:[#allocation10] sm:$0xff] %v348
    // Predicated region
    $region22: #{tpu_custom_call.1} parent=1 // pred_check
      _
    $region23: #{tpu_custom_call.1} parent=1 // pred_check_branch
      %351 = sbr.rel (0) target = $region25
    $region24: #{tpu_custom_call.1} parent=1 // pred_region
      %s353 = ssub.s32 256, 256
      %354 = vsyncadd [#allocation4], %s353
      %s355 = sshll.u32 [#allocation7], 4
      %s356 = int_to_ptr.vmem [resolvable:$true] %s355
      %361 = dma.vmem_to_hbm [thread:$0]  %s356, 256, %s3, [#allocation4], 128, 128, 8
    $region25: #{tpu_custom_call.1} parent=1 // pred_fallthru
      _
    // Predicated region
    $region26: #{tpu_custom_call.1} parent=1 // pred_check
      _
    $region27: #{tpu_custom_call.1} parent=1 // pred_check_branch
      %363 = sbr.rel (0) target = $region29
    $region28: #{tpu_custom_call.1} parent=1 // pred_region
      %s365 = ssub.s32 128, 128
      %366 = vsyncadd [#allocation9], %s365
      %s368 = sshll.u32 [#allocation8], 4
      %s369 = int_to_ptr.vmem [resolvable:$true] %s368
      %371 = dma.vmem_to_hbm [thread:$0]  %s369, 128, %s4, [#allocation9]
    $region29: #{tpu_custom_call.1} parent=1 // pred_fallthru
      _
    // Predicated region
    $region30: #{tpu_custom_call.1} parent=1 // pred_check
      _
    $region31: #{tpu_custom_call.1} parent=1 // pred_check_branch
      %373 = sbr.rel (0) target = $region33
    $region32: #{tpu_custom_call.1} parent=1 // pred_region
      %s375 = ssub.s32 128, 128
      %376 = vsyncadd [#allocation9], %s375
      %s378 = sshll.u32 [#allocation10], 4
      %s379 = int_to_ptr.vmem [resolvable:$true] %s378
      %381 = dma.vmem_to_hbm [thread:$0]  %s379, 128, %s5, [#allocation9]
    $region33: #{tpu_custom_call.1} parent=1 // pred_fallthru
      _
    // Predicated region
    $region34: #{tpu_custom_call.1} parent=1 // pred_check
      _
    $region35: #{tpu_custom_call.1} parent=1 // pred_check_branch
      %383 = sbr.rel (0) target = $region37
    $region36: #{tpu_custom_call.1} parent=1 // pred_region
      %384 = dma.done [#allocation4], 256
    $region37: #{tpu_custom_call.1} parent=1 // pred_fallthru
      _
    // Predicated region
    $region38: #{tpu_custom_call.1} parent=1 // pred_check
      _
    $region39: #{tpu_custom_call.1} parent=1 // pred_check_branch
      %386 = sbr.rel (0) target = $region41
    $region40: #{tpu_custom_call.1} parent=1 // pred_region
      %387 = dma.done [#allocation9], 128
    $region41: #{tpu_custom_call.1} parent=1 // pred_fallthru
      _
    // Predicated region
    $region42: #{tpu_custom_call.1} parent=1 // pred_check
      _
    $region43: #{tpu_custom_call.1} parent=1 // pred_check_branch
      %389 = sbr.rel (0) target = $region45
    $region44: #{tpu_custom_call.1} parent=1 // pred_region
      %390 = dma.done [#allocation9], 128
    $region45: #{tpu_custom_call.1} parent=1 // pred_fallthru
      _
    %391 = vsyncpa [#allocation3], 1
    %392 = vsyncpa [#allocation6], 1
    %393 = vsyncpa [#allocation4], 1
    %394 = vsyncpa [#allocation9], 1

</llo_original>
